<compile_context>
chip_gen: v7x
topology: tpu7x:2x2x1
jax: 0.10.0
libtpu: 0.0.40
codegen_flags: <defaults>
</compile_context>

<pallas_src>
import jax
import jax.numpy as jnp
from jax.experimental import pallas as pl
from jax.experimental.pallas import tpu as pltpu

HIDDEN = 128
IN_POS = 4
IN_THETA = 2
IN_FEATURES = IN_POS + IN_THETA   # 6 (pos ++ theta)
OUT_FEATURES = 4
MAX_TILE_B = 2048                 # rows per grid step; few MB VMEM even at this size


def _mlp_kernel(pos_ref, theta_ref, w1_ref, b1_ref, w2_ref, b2_ref,
                w3_ref, b3_ref, w4_ref, b4_ref, o_ref, xpad_ref):
    """4-layer MLP forward for one (tb, *) batch tile; weights resident in VMEM."""
    # Lane-pad the (tb, 6) inputs to (tb, 128) entirely in VMEM.  Zero-fill every
    # step (see header note about "parallel" grids on v7x), then overwrite the
    # 6 live columns with this tile's pos / theta.
    xpad_ref[...] = jnp.zeros_like(xpad_ref)
    xpad_ref[:, :IN_POS] = pos_ref[...]
    xpad_ref[:, IN_POS:IN_FEATURES] = theta_ref[...]

    # bf16 MXU operands, f32 accumulation; elementwise stays f32.
    x = xpad_ref[...].astype(jnp.bfloat16)                             # (tb, 128)

    h = jnp.dot(x, w1_ref[...], preferred_element_type=jnp.float32)
    h = jnp.maximum(h + b1_ref[...], 0.0)                              # relu(f1)

    h = jnp.dot(h.astype(jnp.bfloat16), w2_ref[...],
                preferred_element_type=jnp.float32)
    h = jnp.maximum(h + b2_ref[...], 0.0)                              # relu(f2)

    h = jnp.dot(h.astype(jnp.bfloat16), w3_ref[...],
                preferred_element_type=jnp.float32)
    h = jnp.maximum(h + b3_ref[...], 0.0)                              # relu(f3)

    z = jnp.dot(h.astype(jnp.bfloat16), w4_ref[...],
                preferred_element_type=jnp.float32)
    z = z + b4_ref[...]                                                # f4 (lane-padded)
    s = 0.5 * jnp.tanh(0.5 * z) + 0.5                                  # exact sigmoid, 1 EUP op
    o_ref[...] = s[:, :OUT_FEATURES]                                   # (tb, 4)


def prepare_params(params):
    """One-time prep: bf16 weights padded to 128x128, f32 biases as (1,128)."""
    w1 = jnp.zeros((HIDDEN, HIDDEN), jnp.bfloat16).at[:IN_FEATURES, :].set(
        params["w1"].astype(jnp.bfloat16))
    w2 = params["w2"].astype(jnp.bfloat16)
    w3 = params["w3"].astype(jnp.bfloat16)
    w4 = jnp.zeros((HIDDEN, HIDDEN), jnp.bfloat16).at[:, :OUT_FEATURES].set(
        params["w4"].astype(jnp.bfloat16))
    b1 = params["b1"].reshape(1, HIDDEN).astype(jnp.float32)
    b2 = params["b2"].reshape(1, HIDDEN).astype(jnp.float32)
    b3 = params["b3"].reshape(1, HIDDEN).astype(jnp.float32)
    b4 = jnp.zeros((1, HIDDEN), jnp.float32).at[0, :OUT_FEATURES].set(
        params["b4"].astype(jnp.float32))
    return (w1, b1, w2, b2, w3, b3, w4, b4)


def _round_up(n, m):
    return ((n + m - 1) // m) * m


def _choose_tiling(batch):
    """Pick (tile_rows, n_tiles): minimal row waste, even tile count when >1."""
    b8 = _round_up(max(batch, 1), 8)
    if b8 <= 512:
        n_tiles = 1                                   # tiny batch: one step
    else:
        n_tiles = pl.cdiv(b8, MAX_TILE_B)
        n_tiles = max(2, n_tiles + (n_tiles % 2))     # even grid -> both v7x TCs busy
    tb = _round_up(pl.cdiv(b8, n_tiles), 8)           # sublane-aligned tile
    return tb, n_tiles


@jax.jit
def nn_forward(pos, theta, prepped):
    """JAX wrapper reproducing NN.forward(pos, theta). `prepped` from prepare_params."""
    w1, b1, w2, b2, w3, b3, w4, b4 = prepped
    pos = pos.astype(jnp.float32)
    theta = theta.astype(jnp.float32)
    B = pos.shape[0]

    tb, n_tiles = _choose_tiling(B)
    b_pad = tb * n_tiles
    if b_pad != B:                                    # cheap: only 6 f32 per row
        pos = jnp.pad(pos, ((0, b_pad - B), (0, 0)))
        theta = jnp.pad(theta, ((0, b_pad - B), (0, 0)))

    weight_spec = pl.BlockSpec((HIDDEN, HIDDEN), lambda i: (0, 0))    # VMEM-resident
    bias_spec = pl.BlockSpec((1, HIDDEN), lambda i: (0, 0))           # VMEM-resident

    flops = 2 * b_pad * (IN_FEATURES * HIDDEN + 2 * HIDDEN * HIDDEN
                         + HIDDEN * OUT_FEATURES)
    bytes_accessed = (4 * b_pad * (IN_POS + IN_THETA + OUT_FEATURES)  # f32 activations
                      + 2 * 4 * HIDDEN * HIDDEN                       # bf16 weights
                      + 4 * 4 * HIDDEN)                               # f32 biases

    out = pl.pallas_call(
        _mlp_kernel,
        out_shape=jax.ShapeDtypeStruct((b_pad, OUT_FEATURES), jnp.float32),
        grid=(n_tiles,),
        in_specs=[
            pl.BlockSpec((tb, IN_POS), lambda i: (i, 0)),             # pos   (b_pad, 4)
            pl.BlockSpec((tb, IN_THETA), lambda i: (i, 0)),           # theta (b_pad, 2)
            weight_spec, bias_spec,                                   # w1, b1
            weight_spec, bias_spec,                                   # w2, b2
            weight_spec, bias_spec,                                   # w3, b3
            weight_spec, bias_spec,                                   # w4, b4
        ],
        out_specs=pl.BlockSpec((tb, OUT_FEATURES), lambda i: (i, 0)),
        scratch_shapes=[pltpu.VMEM((tb, HIDDEN), jnp.float32)],       # lane-padded x tile
        compiler_params=pltpu.CompilerParams(
            dimension_semantics=("parallel",)),                       # shard batch across TCs
        cost_estimate=pl.CostEstimate(flops=flops,
                                      transcendentals=b_pad * HIDDEN,
                                      bytes_accessed=bytes_accessed),
    )(pos, theta, w1, b1, w2, b2, w3, b3, w4, b4)

    return out[:B]                                                    # (B, 4)


def init_params(key):
    """Deterministic init mirroring nn.Linear default (U(-1/sqrt(fan_in), +))."""
    def linear(k, fan_in, fan_out):
        kw, kb = jax.random.split(k)
        bound = 1.0 / jnp.sqrt(fan_in)
        w = jax.random.uniform(kw, (fan_in, fan_out), jnp.float32, -bound, bound)
        b = jax.random.uniform(kb, (fan_out,), jnp.float32, -bound, bound)
        return w, b

    k1, k2, k3, k4 = jax.random.split(key, 4)
    w1, b1 = linear(k1, IN_FEATURES, HIDDEN)
    w2, b2 = linear(k2, HIDDEN, HIDDEN)
    w3, b3 = linear(k3, HIDDEN, HIDDEN)
    w4, b4 = linear(k4, HIDDEN, OUT_FEATURES)
    return dict(w1=w1, b1=b1, w2=w2, b2=b2, w3=w3, b3=b3, w4=w4, b4=b4)


def reference_forward(pos, theta, p):
    """Pure-JAX f32 reference for correctness check."""
    x = jnp.concatenate([pos, theta], axis=1)
    x = jax.nn.relu(x @ p["w1"] + p["b1"])
    x = jax.nn.relu(x @ p["w2"] + p["b2"])
    x = jax.nn.relu(x @ p["w3"] + p["b3"])
    return jax.nn.sigmoid(x @ p["w4"] + p["b4"])


if __name__ == "__main__":
    key = jax.random.PRNGKey(0)
    k_params, k_p1, k_t1, k_p2, k_t2 = jax.random.split(key, 5)

    params = init_params(k_params)
    prepped = prepare_params(params)   # one-time weight padding / bf16 cast

    # Tolerance: kernel runs bf16 MXU operands (f32 accumulation) vs an f32
    # reference; observed error is ~1e-3, 1e-2 leaves comfortable margin.
    ATOL = 1e-2
    RTOL = 1e-2

    # Small batch NOT a multiple of 8 -> exercises row padding, single tile.
    B1 = 10
    pos1 = jax.random.normal(k_p1, (B1, IN_POS), jnp.float32)
    theta1 = jax.random.normal(k_t1, (B1, IN_THETA), jnp.float32)
    out1 = jax.block_until_ready(nn_forward(pos1, theta1, prepped))
    ref1 = reference_forward(pos1, theta1, params)
    assert out1.shape == (B1, OUT_FEATURES)
    assert jnp.allclose(out1, ref1, atol=ATOL, rtol=RTOL), "mismatch vs reference (B=10)"

    # Larger batch -> exercises the multi-tile (even) pipelined grid.
    B2 = 600
    pos2 = jax.random.normal(k_p2, (B2, IN_POS), jnp.float32)
    theta2 = jax.random.normal(k_t2, (B2, IN_THETA), jnp.float32)
    out2 = jax.block_until_ready(nn_forward(pos2, theta2, prepped))
    ref2 = reference_forward(pos2, theta2, params)
    assert out2.shape == (B2, OUT_FEATURES)
    assert jnp.allclose(out2, ref2, atol=ATOL, rtol=RTOL), "mismatch vs reference (B=600)"

    print("KERNEL_OK")
</pallas_src>

<mosaic_0001>
module attributes {stable_mosaic.version = 11 : i64} {
  func.func @_mlp_kernel(%arg0: i32, %arg1: memref<16x4xf32, #tpu.memory_space<vmem>>, %arg2: memref<16x2xf32, #tpu.memory_space<vmem>>, %arg3: memref<128x128xbf16, #tpu.memory_space<vmem>>, %arg4: memref<1x128xf32, #tpu.memory_space<vmem>>, %arg5: memref<128x128xbf16, #tpu.memory_space<vmem>>, %arg6: memref<1x128xf32, #tpu.memory_space<vmem>>, %arg7: memref<128x128xbf16, #tpu.memory_space<vmem>>, %arg8: memref<1x128xf32, #tpu.memory_space<vmem>>, %arg9: memref<128x128xbf16, #tpu.memory_space<vmem>>, %arg10: memref<1x128xf32, #tpu.memory_space<vmem>>, %arg11: memref<16x4xf32, #tpu.memory_space<vmem>>, %arg12: memref<16x128xf32, #tpu.memory_space<vmem>>) attributes {dimension_semantics = [#tpu.dimension_semantics<parallel>], iteration_bounds = array<i64: 1>, scalar_prefetch = 0 : i64, scratch_operands = 1 : i64, tpu.core_type = #tpu.core_type<tc>, window_params = [{transform_indices = @transform_0, window_bounds = array<i64: 16, 4>}, {transform_indices = @transform_1, window_bounds = array<i64: 16, 2>}, {pipeline_mode = #tpu.pipeline_mode<synchronous>, transform_indices = @transform_2, window_bounds = array<i64: 128, 128>}, {pipeline_mode = #tpu.pipeline_mode<synchronous>, transform_indices = @transform_3, window_bounds = array<i64: 1, 128>}, {pipeline_mode = #tpu.pipeline_mode<synchronous>, transform_indices = @transform_4, window_bounds = array<i64: 128, 128>}, {pipeline_mode = #tpu.pipeline_mode<synchronous>, transform_indices = @transform_5, window_bounds = array<i64: 1, 128>}, {pipeline_mode = #tpu.pipeline_mode<synchronous>, transform_indices = @transform_6, window_bounds = array<i64: 128, 128>}, {pipeline_mode = #tpu.pipeline_mode<synchronous>, transform_indices = @transform_7, window_bounds = array<i64: 1, 128>}, {pipeline_mode = #tpu.pipeline_mode<synchronous>, transform_indices = @transform_8, window_bounds = array<i64: 128, 128>}, {pipeline_mode = #tpu.pipeline_mode<synchronous>, transform_indices = @transform_9, window_bounds = array<i64: 1, 128>}, {transform_indices = @transform_10, window_bounds = array<i64: 16, 4>}]} {
    %cst = arith.constant 0.000000e+00 : f32
    %0 = vector.broadcast %cst : f32 to vector<16x128xf32>
    %c0 = arith.constant 0 : index
    %c0_0 = arith.constant 0 : index
    %1 = vector.load %arg12[%c0, %c0_0] : memref<16x128xf32, #tpu.memory_space<vmem>>, vector<16x128xf32>
    tpu.vector_store %arg12[%c0, %c0_0], %0 {strides = array<i32>} : memref<16x128xf32, #tpu.memory_space<vmem>>, vector<16x128xf32>,
    %c0_1 = arith.constant 0 : index
    %c0_2 = arith.constant 0 : index
    %2 = vector.load %arg1[%c0_1, %c0_2] : memref<16x4xf32, #tpu.memory_space<vmem>>, vector<16x4xf32>
    %c0_3 = arith.constant 0 : index
    %c0_4 = arith.constant 0 : index
    %3 = vector.load %arg12[%c0_3, %c0_4] : memref<16x128xf32, #tpu.memory_space<vmem>>, vector<16x4xf32>
    tpu.vector_store %arg12[%c0_3, %c0_4], %2 {strides = array<i32>} : memref<16x128xf32, #tpu.memory_space<vmem>>, vector<16x4xf32>,
    %c0_5 = arith.constant 0 : index
    %c0_6 = arith.constant 0 : index
    %4 = vector.load %arg2[%c0_5, %c0_6] : memref<16x2xf32, #tpu.memory_space<vmem>>, vector<16x2xf32>
    %c0_7 = arith.constant 0 : index
    %c4 = arith.constant 4 : index
    %5 = vector.load %arg12[%c0_7, %c4] : memref<16x128xf32, #tpu.memory_space<vmem>>, vector<16x2xf32>
    tpu.vector_store %arg12[%c0_7, %c4], %4 {strides = array<i32>} : memref<16x128xf32, #tpu.memory_space<vmem>>, vector<16x2xf32>,
    %c0_8 = arith.constant 0 : index
    %c0_9 = arith.constant 0 : index
    %6 = vector.load %arg12[%c0_8, %c0_9] : memref<16x128xf32, #tpu.memory_space<vmem>>, vector<16x128xf32>
    %7 = arith.truncf %6 : vector<16x128xf32> to vector<16x128xbf16>
    %c0_10 = arith.constant 0 : index
    %c0_11 = arith.constant 0 : index
    %8 = vector.load %arg3[%c0_10, %c0_11] : memref<128x128xbf16, #tpu.memory_space<vmem>>, vector<128x128xbf16>
    %cst_12 = arith.constant dense<0.000000e+00> : vector<16x128xf32>
    %9 = tpu.matmul %7, %8, %cst_12 {dimension_numbers = #tpu.dot_dimension_numbers<[1], [0], [0], [1], [0, 0, 1, 1], [], []>} : vector<16x128xbf16>, vector<128x128xbf16>, vector<16x128xf32> -> vector<16x128xf32>
    %c0_13 = arith.constant 0 : index
    %c0_14 = arith.constant 0 : index
    %10 = vector.load %arg4[%c0_13, %c0_14] : memref<1x128xf32, #tpu.memory_space<vmem>>, vector<1x128xf32>
    %11 = vector.broadcast %10 : vector<1x128xf32> to vector<16x128xf32>
    %12 = arith.addf %9, %11 : vector<16x128xf32>
    %cst_15 = arith.constant 0.000000e+00 : f32
    %13 = vector.broadcast %cst_15 : f32 to vector<16x128xf32>
    %14 = arith.maximumf %12, %13 : vector<16x128xf32>
    %15 = arith.truncf %14 : vector<16x128xf32> to vector<16x128xbf16>
    %c0_16 = arith.constant 0 : index
    %c0_17 = arith.constant 0 : index
    %16 = vector.load %arg5[%c0_16, %c0_17] : memref<128x128xbf16, #tpu.memory_space<vmem>>, vector<128x128xbf16>
    %cst_18 = arith.constant dense<0.000000e+00> : vector<16x128xf32>
    %17 = tpu.matmul %15, %16, %cst_18 {dimension_numbers = #tpu.dot_dimension_numbers<[1], [0], [0], [1], [0, 0, 1, 1], [], []>} : vector<16x128xbf16>, vector<128x128xbf16>, vector<16x128xf32> -> vector<16x128xf32>
    %c0_19 = arith.constant 0 : index
    %c0_20 = arith.constant 0 : index
    %18 = vector.load %arg6[%c0_19, %c0_20] : memref<1x128xf32, #tpu.memory_space<vmem>>, vector<1x128xf32>
    %19 = vector.broadcast %18 : vector<1x128xf32> to vector<16x128xf32>
    %20 = arith.addf %17, %19 : vector<16x128xf32>
    %cst_21 = arith.constant 0.000000e+00 : f32
    %21 = vector.broadcast %cst_21 : f32 to vector<16x128xf32>
    %22 = arith.maximumf %20, %21 : vector<16x128xf32>
    %23 = arith.truncf %22 : vector<16x128xf32> to vector<16x128xbf16>
    %c0_22 = arith.constant 0 : index
    %c0_23 = arith.constant 0 : index
    %24 = vector.load %arg7[%c0_22, %c0_23] : memref<128x128xbf16, #tpu.memory_space<vmem>>, vector<128x128xbf16>
    %cst_24 = arith.constant dense<0.000000e+00> : vector<16x128xf32>
    %25 = tpu.matmul %23, %24, %cst_24 {dimension_numbers = #tpu.dot_dimension_numbers<[1], [0], [0], [1], [0, 0, 1, 1], [], []>} : vector<16x128xbf16>, vector<128x128xbf16>, vector<16x128xf32> -> vector<16x128xf32>
    %c0_25 = arith.constant 0 : index
    %c0_26 = arith.constant 0 : index
    %26 = vector.load %arg8[%c0_25, %c0_26] : memref<1x128xf32, #tpu.memory_space<vmem>>, vector<1x128xf32>
    %27 = vector.broadcast %26 : vector<1x128xf32> to vector<16x128xf32>
    %28 = arith.addf %25, %27 : vector<16x128xf32>
    %cst_27 = arith.constant 0.000000e+00 : f32
    %29 = vector.broadcast %cst_27 : f32 to vector<16x128xf32>
    %30 = arith.maximumf %28, %29 : vector<16x128xf32>
    %31 = arith.truncf %30 : vector<16x128xf32> to vector<16x128xbf16>
    %c0_28 = arith.constant 0 : index
    %c0_29 = arith.constant 0 : index
    %32 = vector.load %arg9[%c0_28, %c0_29] : memref<128x128xbf16, #tpu.memory_space<vmem>>, vector<128x128xbf16>
    %cst_30 = arith.constant dense<0.000000e+00> : vector<16x128xf32>
    %33 = tpu.matmul %31, %32, %cst_30 {dimension_numbers = #tpu.dot_dimension_numbers<[1], [0], [0], [1], [0, 0, 1, 1], [], []>} : vector<16x128xbf16>, vector<128x128xbf16>, vector<16x128xf32> -> vector<16x128xf32>
    %c0_31 = arith.constant 0 : index
    %c0_32 = arith.constant 0 : index
    %34 = vector.load %arg10[%c0_31, %c0_32] : memref<1x128xf32, #tpu.memory_space<vmem>>, vector<1x128xf32>
    %35 = vector.broadcast %34 : vector<1x128xf32> to vector<16x128xf32>
    %36 = arith.addf %33, %35 : vector<16x128xf32>
    %cst_33 = arith.constant 5.000000e-01 : f32
    %37 = vector.broadcast %cst_33 : f32 to vector<16x128xf32>
    %38 = arith.mulf %37, %36 : vector<16x128xf32>
    %39 = math.tanh %38 : vector<16x128xf32>
    %cst_34 = arith.constant 5.000000e-01 : f32
    %40 = vector.broadcast %cst_34 : f32 to vector<16x128xf32>
    %41 = arith.mulf %40, %39 : vector<16x128xf32>
    %cst_35 = arith.constant 5.000000e-01 : f32
    %42 = vector.broadcast %cst_35 : f32 to vector<16x128xf32>
    %43 = arith.addf %41, %42 : vector<16x128xf32>
    %44 = vector.extract_strided_slice %43 {offsets = [0, 0], sizes = [16, 4], strides = [1, 1]} : vector<16x128xf32> to vector<16x4xf32>
    %c0_36 = arith.constant 0 : index
    %c0_37 = arith.constant 0 : index
    %45 = vector.load %arg11[%c0_36, %c0_37] : memref<16x4xf32, #tpu.memory_space<vmem>>, vector<16x4xf32>
    tpu.vector_store %arg11[%c0_36, %c0_37], %44 {strides = array<i32>} : memref<16x4xf32, #tpu.memory_space<vmem>>, vector<16x4xf32>,
    return
  }
  func.func @transform_0(%arg0: i32) -> (i32, i32) {
    %c0_i32 = arith.constant 0 : i32
    %c0_i32_0 = arith.constant 0 : i32
    return %arg0, %c0_i32 : i32, i32
  }
  func.func @transform_1(%arg0: i32) -> (i32, i32) {
    %c0_i32 = arith.constant 0 : i32
    %c0_i32_0 = arith.constant 0 : i32
    return %arg0, %c0_i32 : i32, i32
  }
  func.func @transform_2(%arg0: i32) -> (i32, i32) {
    %c0_i32 = arith.constant 0 : i32
    %c0_i32_0 = arith.constant 0 : i32
    %c0_i32_1 = arith.constant 0 : i32
    return %c0_i32, %c0_i32_0 : i32, i32
  }
  func.func @transform_3(%arg0: i32) -> (i32, i32) {
    %c0_i32 = arith.constant 0 : i32
    %c0_i32_0 = arith.constant 0 : i32
    %c0_i32_1 = arith.constant 0 : i32
    return %c0_i32, %c0_i32_0 : i32, i32
  }
  func.func @transform_4(%arg0: i32) -> (i32, i32) {
    %c0_i32 = arith.constant 0 : i32
    %c0_i32_0 = arith.constant 0 : i32
    %c0_i32_1 = arith.constant 0 : i32
    return %c0_i32, %c0_i32_0 : i32, i32
  }
  func.func @transform_5(%arg0: i32) -> (i32, i32) {
    %c0_i32 = arith.constant 0 : i32
    %c0_i32_0 = arith.constant 0 : i32
    %c0_i32_1 = arith.constant 0 : i32
    return %c0_i32, %c0_i32_0 : i32, i32
  }
  func.func @transform_6(%arg0: i32) -> (i32, i32) {
    %c0_i32 = arith.constant 0 : i32
    %c0_i32_0 = arith.constant 0 : i32
    %c0_i32_1 = arith.constant 0 : i32
    return %c0_i32, %c0_i32_0 : i32, i32
  }
  func.func @transform_7(%arg0: i32) -> (i32, i32) {
    %c0_i32 = arith.constant 0 : i32
    %c0_i32_0 = arith.constant 0 : i32
    %c0_i32_1 = arith.constant 0 : i32
    return %c0_i32, %c0_i32_0 : i32, i32
  }
  func.func @transform_8(%arg0: i32) -> (i32, i32) {
    %c0_i32 = arith.constant 0 : i32
    %c0_i32_0 = arith.constant 0 : i32
    %c0_i32_1 = arith.constant 0 : i32
    return %c0_i32, %c0_i32_0 : i32, i32
  }
  func.func @transform_9(%arg0: i32) -> (i32, i32) {
    %c0_i32 = arith.constant 0 : i32
    %c0_i32_0 = arith.constant 0 : i32
    %c0_i32_1 = arith.constant 0 : i32
    return %c0_i32, %c0_i32_0 : i32, i32
  }
  func.func @transform_10(%arg0: i32) -> (i32, i32) {
    %c0_i32 = arith.constant 0 : i32
    %c0_i32_0 = arith.constant 0 : i32
    return %arg0, %c0_i32 : i32, i32
  }
}

</mosaic_0001>

<llo_original>
// kernel: nn_forward.1
$region0: #{nn_forward.1}
  #allocation0 [shape = 'u32[]', space=smem, size = 0x4, offset = 0x4, fixed_abs, tag = 'smem constant byte address 0x4 - core index']
  #allocation1 [shape = 'u32[144,128]{1,0:T(1,128)}', space=vmem, size = 0x12000, scoped, tag = 'internal scratch']
  #allocation2 [shape = 'f32[16,128]{1,0:T(8,128)}', space=vmem, size = 0x2000, scoped, tag = 'scratch operand']
  %s0 = inlined_call_operand.vmem [shape: f32[16,4], index: 0, kind: input, shape index: {}]
  %s1 = inlined_call_operand.vmem [shape: f32[16,2], index: 1, kind: input, shape index: {}]
  %s2 = inlined_call_operand.vmem [shape: bf16[128,128], index: 2, kind: input, shape index: {}]
  %s3 = inlined_call_operand.vmem [shape: f32[1,128], index: 3, kind: input, shape index: {}]
  %s4 = inlined_call_operand.hbm [shape: bf16[128,128], index: 4, kind: input, shape index: {}]
  %s5 = inlined_call_operand.vmem [shape: f32[1,128], index: 5, kind: input, shape index: {}]
  %s6 = inlined_call_operand.hbm [shape: bf16[128,128], index: 6, kind: input, shape index: {}]
  %s7 = inlined_call_operand.hbm [shape: f32[1,128], index: 7, kind: input, shape index: {}]
  %s8 = inlined_call_operand.vmem [shape: bf16[128,128], index: 8, kind: input, shape index: {}]
  %s9 = inlined_call_operand.vmem [shape: f32[1,128], index: 9, kind: input, shape index: {}]
  %s10 = inlined_call_operand.vmem [shape: f32[16,4], index: 10, kind: output, shape index: {}]
  %s11 = sld [smem:[#allocation0]]
  $region62: #{nn_forward.1} parent=0
    _
  %s13 = ssub.s32 1, %s11
  %s14 = scalar_select 0, %s13, %s11
  $region1: #{nn_forward.1} parent=0
    #allocation3 [shape = 'u8[32768]{0}', space=vmem, size = 0x8000, scoped, tag = 'input window, operand 4, single buffered']
    #allocation4 [shape = 's32[1]{0}', space=sflag, size = 0x4, scoped, tag = 'scoped memory for nn_forward.1']
    #allocation5 [shape = 'u8[32768]{0}', space=vmem, size = 0x8000, scoped, tag = 'input window, operand 6, single buffered']
    #allocation6 [shape = 's32[1]{0}', space=sflag, size = 0x4, scoped, tag = 'scoped memory for nn_forward.1']
    #allocation7 [shape = 'u8[512]{0}', space=vmem, size = 0x400, scoped, tag = 'input window, operand 7, single buffered']
    %15 = vsyncpa [#allocation4], 0
    %16 = vsyncpa [#allocation6], 0
    // Predicated region
    $region2: #{nn_forward.1} parent=1 // pred_check
      _
    $region3: #{nn_forward.1} parent=1 // pred_check_branch
      %18 = sbr.rel (0) target = $region5
    $region4: #{nn_forward.1} parent=1 // pred_region
      _
    $region5: #{nn_forward.1} parent=1 // pred_fallthru
      _
    // Predicated region
    $region6: #{nn_forward.1} parent=1 // pred_check
      _
    $region7: #{nn_forward.1} parent=1 // pred_check_branch
      %20 = sbr.rel (0) target = $region9
    $region8: #{nn_forward.1} parent=1 // pred_region
      _
    $region9: #{nn_forward.1} parent=1 // pred_fallthru
      _
    // Predicated region
    $region10: #{nn_forward.1} parent=1 // pred_check
      _
    $region11: #{nn_forward.1} parent=1 // pred_check_branch
      %22 = sbr.rel (0) target = $region13
    $region12: #{nn_forward.1} parent=1 // pred_region
      _
    $region13: #{nn_forward.1} parent=1 // pred_fallthru
      _
    // Predicated region
    $region14: #{nn_forward.1} parent=1 // pred_check
      _
    $region15: #{nn_forward.1} parent=1 // pred_check_branch
      %24 = sbr.rel (0) target = $region17
    $region16: #{nn_forward.1} parent=1 // pred_region
      _
    $region17: #{nn_forward.1} parent=1 // pred_fallthru
      _
    // Predicated region
    $region18: #{nn_forward.1} parent=1 // pred_check
      _
    $region19: #{nn_forward.1} parent=1 // pred_check_branch
      %26 = sbr.rel (0) target = $region21
    $region20: #{nn_forward.1} parent=1 // pred_region
      %s28 = ssub.s32 1024, 1024
      %29 = vsyncadd [#allocation4], %s28
      %s30 = sshll.u32 [#allocation3], 4
      %s31 = int_to_ptr.vmem [resolvable:$true] %s30
      %36 = dma.hbm_to_vmem [thread:$0]  %s4, 1024, %s31, [#allocation4], 64, 64, 4
    $region21: #{nn_forward.1} parent=1 // pred_fallthru
      _
    // Predicated region
    $region22: #{nn_forward.1} parent=1 // pred_check
      _
    $region23: #{nn_forward.1} parent=1 // pred_check_branch
      %38 = sbr.rel (0) target = $region25
    $region24: #{nn_forward.1} parent=1 // pred_region
      _
    $region25: #{nn_forward.1} parent=1 // pred_fallthru
      _
    // Predicated region
    $region26: #{nn_forward.1} parent=1 // pred_check
      _
    $region27: #{nn_forward.1} parent=1 // pred_check_branch
      %40 = sbr.rel (0) target = $region29
    $region28: #{nn_forward.1} parent=1 // pred_region
      %s42 = ssub.s32 1024, 1024
      %43 = vsyncadd [#allocation6], %s42
      %s44 = sshll.u32 [#allocation5], 4
      %s45 = int_to_ptr.vmem [resolvable:$true] %s44
      %50 = dma.hbm_to_vmem [thread:$0]  %s6, 1024, %s45, [#allocation6], 64, 64, 4
    $region29: #{nn_forward.1} parent=1 // pred_fallthru
      _
    // Predicated region
    $region30: #{nn_forward.1} parent=1 // pred_check
      _
    $region31: #{nn_forward.1} parent=1 // pred_check_branch
      %52 = sbr.rel (0) target = $region33
    $region32: #{nn_forward.1} parent=1 // pred_region
      %s54 = ssub.s32 16, 16
      %55 = vsyncadd [#allocation6], %s54
      %s57 = sshll.u32 [#allocation7], 4
      %s58 = int_to_ptr.vmem [resolvable:$true] %s57
      %60 = dma.hbm_to_vmem [thread:$0]  %s7, 16, %s58, [#allocation6]
    $region33: #{nn_forward.1} parent=1 // pred_fallthru
      _
    // Predicated region
    $region34: #{nn_forward.1} parent=1 // pred_check
      _
    $region35: #{nn_forward.1} parent=1 // pred_check_branch
      %62 = sbr.rel (0) target = $region37
    $region36: #{nn_forward.1} parent=1 // pred_region
      _
    $region37: #{nn_forward.1} parent=1 // pred_fallthru
      _
    // Predicated region
    $region38: #{nn_forward.1} parent=1 // pred_check
      _
    $region39: #{nn_forward.1} parent=1 // pred_check_branch
      %64 = sbr.rel (0) target = $region41
    $region40: #{nn_forward.1} parent=1 // pred_region
      _
    $region41: #{nn_forward.1} parent=1 // pred_fallthru
      _
    // Predicated region
    $region42: #{nn_forward.1} parent=1 // pred_check
      _
    $region43: #{nn_forward.1} parent=1 // pred_check_branch
      %66 = sbr.rel (0) target = $region45
    $region44: #{nn_forward.1} parent=1 // pred_region
      %67 = dma.done [#allocation4], 1024
    $region45: #{nn_forward.1} parent=1 // pred_fallthru
      _
    // Predicated region
    $region46: #{nn_forward.1} parent=1 // pred_check
      _
    $region47: #{nn_forward.1} parent=1 // pred_check_branch
      %69 = sbr.rel (0) target = $region49
    $region48: #{nn_forward.1} parent=1 // pred_region
      %70 = dma.done [#allocation6], 1024
    $region49: #{nn_forward.1} parent=1 // pred_fallthru
      _
    // Predicated region
    $region50: #{nn_forward.1} parent=1 // pred_check
      _
    $region51: #{nn_forward.1} parent=1 // pred_check_branch
      %72 = sbr.rel (0) target = $region53
    $region52: #{nn_forward.1} parent=1 // pred_region
      %73 = dma.done [#allocation6], 16
    $region53: #{nn_forward.1} parent=1 // pred_fallthru
      _
    %75 = vst [vmem:[#allocation2] sm:$0xff] 0.0
    %76 = vst [vmem:[#allocation2 + $0x8] sm:$0xff] 0.0
    %v77 = vld [vmem:[%s0] sm:$0xff]
    %v78 = vld [vmem:[%s0 + $0x8] sm:$0xff]
    %vm79 = vcmask 31744
    %80 = vst.msk [vmem:[#allocation2] sm:$0xff] %vm79, %v77
    %81 = vst.msk [vmem:[#allocation2 + $0x8] sm:$0xff] %vm79, %v78
    %v82 = vld [vmem:[%s1] sm:$0xff]
    %v83 = vld [vmem:[%s1 + $0x8] sm:$0xff]
    %86 = vrot.lane.b32.xlu0 %v82, 4
    %v87 = vpop.permute.xlu0 %86
    %88 = vrot.lane.b32.xlu0 %v83, 4
    %v89 = vpop.permute.xlu0 %88
    %vm92 = vcmask 48160
    %93 = vst.msk [vmem:[#allocation2] sm:$0xff] %vm92, %v87
    %94 = vst.msk [vmem:[#allocation2 + $0x8] sm:$0xff] %vm92, %v89
    %v95 = vld [vmem:[#allocation2] sm:$0xff]
    %v96 = vld [vmem:[#allocation2 + $0x8] sm:$0xff]
    %v97 = vpack.c.bf16 %v96, %v95
    %v98 = vld [vmem:[%s2] sm:$0xf]
    %v99 = vld [vmem:[%s2 + $0x4] sm:$0xf]
    %v100 = vld [vmem:[%s2 + $0x8] sm:$0xf]
    %v101 = vld [vmem:[%s2 + $0xc] sm:$0xf]
    %v102 = vld [vmem:[%s2 + $0x10] sm:$0xf]
    %v103 = vld [vmem:[%s2 + $0x14] sm:$0xf]
    %v104 = vld [vmem:[%s2 + $0x18] sm:$0xf]
    %v105 = vld [vmem:[%s2 + $0x1c] sm:$0xf]
    %v106 = vld [vmem:[%s2 + $0x20] sm:$0xf]
    %v107 = vld [vmem:[%s2 + $0x24] sm:$0xf]
    %v108 = vld [vmem:[%s2 + $0x28] sm:$0xf]
    %v109 = vld [vmem:[%s2 + $0x2c] sm:$0xf]
    %v110 = vld [vmem:[%s2 + $0x30] sm:$0xf]
    %v111 = vld [vmem:[%s2 + $0x34] sm:$0xf]
    %v112 = vld [vmem:[%s2 + $0x38] sm:$0xf]
    %v113 = vld [vmem:[%s2 + $0x3c] sm:$0xf]
    %v114 = vld [vmem:[%s3] sm:$0x1]
    %v116 = vlaneseq
    %v117 = vshrl.u32 %v116, 7
    %v118 = vsub.s32 0, %v117
    %v119 = vrot.slane %v114, %v118
    %v137 = vunpack.c.l.b16 %v98
    %v138 = vunpack.c.l.b16 %v99
    %v139 = vunpack.c.l.b16 %v100
    %v140 = vunpack.c.l.b16 %v101
    %v141 = vunpack.c.l.b16 %v102
    %v142 = vunpack.c.l.b16 %v103
    %v143 = vunpack.c.l.b16 %v104
    %v144 = vunpack.c.l.b16 %v105
    %v145 = vunpack.c.l.b16 %v106
    %v146 = vunpack.c.l.b16 %v107
    %v147 = vunpack.c.l.b16 %v108
    %v148 = vunpack.c.l.b16 %v109
    %v149 = vunpack.c.l.b16 %v110
    %v150 = vunpack.c.l.b16 %v111
    %v151 = vunpack.c.l.b16 %v112
    %v152 = vunpack.c.l.b16 %v113
    %v153 = vpack.c.b16 %v138, %v137
    %v154 = vpack.c.b16 %v140, %v139
    %v155 = vpack.c.b16 %v142, %v141
    %v156 = vpack.c.b16 %v144, %v143
    %v157 = vpack.c.b16 %v146, %v145
    %v158 = vpack.c.b16 %v148, %v147
    %v159 = vpack.c.b16 %v150, %v149
    %v160 = vpack.c.b16 %v152, %v151
    %169 = vmatprep.subr.bf16.mxu0 0
    %170 = vmatpush1.bf16.msra.mxu0 %v153
    %171 = vmatprep.subr.bf16.mxu0 0
    %172 = vmatpush1.bf16.msra.mxu0 %v154
    %173 = vmatprep.subr.bf16.mxu0 0
    %174 = vmatpush1.bf16.msra.mxu0 %v155
    %175 = vmatprep.subr.bf16.mxu0 0
    %176 = vmatpush1.bf16.msra.mxu0 %v156
    %177 = vmatprep.subr.bf16.mxu0 0
    %178 = vmatpush1.bf16.msra.mxu0 %v157
    %179 = vmatprep.subr.bf16.mxu0 0
    %180 = vmatpush1.bf16.msra.mxu0 %v158
    %181 = vmatprep.subr.bf16.mxu0 0
    %182 = vmatpush1.bf16.msra.mxu0 %v159
    %183 = vmatprep.subr.bf16.mxu0 0
    %184 = vmatpush1.bf16.msra.mxu0 %v160
    %185 = vmatprep.subr.bf16.mxu0 0
    %186 = vmatpush1.bf16.msra.mxu0 0
    %187 = vmatprep.subr.bf16.mxu0 0
    %188 = vmatpush1.bf16.msra.mxu0 0
    %189 = vmatprep.subr.bf16.mxu0 0
    %190 = vmatpush1.bf16.msra.mxu0 0
    %191 = vmatprep.subr.bf16.mxu0 0
    %192 = vmatpush1.bf16.msra.mxu0 0
    %193 = vmatprep.subr.bf16.mxu0 0
    %194 = vmatpush1.bf16.msra.mxu0 0
    %195 = vmatprep.subr.bf16.mxu0 0
    %196 = vmatpush1.bf16.msra.mxu0 0
    %197 = vmatprep.subr.bf16.mxu0 0
    %198 = vmatpush1.bf16.msra.mxu0 0
    %199 = vmatprep.subr.bf16.mxu0 0
    %200 = vmatpush1.bf16.msra.mxu0 0
    %201 = vmatprep.mubr.bf16.mxu0 0
    %202 = vmatmul.mubr.bf16.gmra.mrb[0].mxu0 %v97
    %v203 = vpop.f32.mrb[0].mxu0
    %v204 = vadd.f32 %v119, %v203
    %v205 = vpop.f32.mrb[0].mxu0
    %v206 = vpop.f32.mrb[0].mxu0
    %v207 = vadd.f32 %v119, %v206
    %v208 = vpop.f32.mrb[0].mxu0
    %209 = vdwg.mxu0
    %v210 = vmax.f32 %v204, 0.0
    %v211 = vmax.f32 %v207, 0.0
    %v212 = vpack.c.bf16 %v211, %v210
    %v213 = vld [vmem:[#allocation3] sm:$0xf]
    %v214 = vld [vmem:[#allocation3 + $0x4] sm:$0xf]
    %v215 = vld [vmem:[#allocation3 + $0x8] sm:$0xf]
    %v216 = vld [vmem:[#allocation3 + $0xc] sm:$0xf]
    %v217 = vld [vmem:[#allocation3 + $0x10] sm:$0xf]
    %v218 = vld [vmem:[#allocation3 + $0x14] sm:$0xf]
    %v219 = vld [vmem:[#allocation3 + $0x18] sm:$0xf]
    %v220 = vld [vmem:[#allocation3 + $0x1c] sm:$0xf]
    %v221 = vld [vmem:[#allocation3 + $0x20] sm:$0xf]
    %v222 = vld [vmem:[#allocation3 + $0x24] sm:$0xf]
    %v223 = vld [vmem:[#allocation3 + $0x28] sm:$0xf]
    %v224 = vld [vmem:[#allocation3 + $0x2c] sm:$0xf]
    %v225 = vld [vmem:[#allocation3 + $0x30] sm:$0xf]
    %v226 = vld [vmem:[#allocation3 + $0x34] sm:$0xf]
    %v227 = vld [vmem:[#allocation3 + $0x38] sm:$0xf]
    %v228 = vld [vmem:[#allocation3 + $0x3c] sm:$0xf]
    %v229 = vld [vmem:[%s5] sm:$0x1]
    %v231 = vlaneseq
    %v232 = vshrl.u32 %v231, 7
    %v233 = vsub.s32 0, %v232
    %v234 = vrot.slane %v229, %v233
    %v252 = vunpack.c.l.b16 %v213
    %v253 = vunpack.c.l.b16 %v214
    %v254 = vunpack.c.l.b16 %v215
    %v255 = vunpack.c.l.b16 %v216
    %v256 = vunpack.c.l.b16 %v217
    %v257 = vunpack.c.l.b16 %v218
    %v258 = vunpack.c.l.b16 %v219
    %v259 = vunpack.c.l.b16 %v220
    %v260 = vunpack.c.l.b16 %v221
    %v261 = vunpack.c.l.b16 %v222
    %v262 = vunpack.c.l.b16 %v223
    %v263 = vunpack.c.l.b16 %v224
    %v264 = vunpack.c.l.b16 %v225
    %v265 = vunpack.c.l.b16 %v226
    %v266 = vunpack.c.l.b16 %v227
    %v267 = vunpack.c.l.b16 %v228
    %v268 = vpack.c.b16 %v253, %v252
    %v269 = vpack.c.b16 %v255, %v254
    %v270 = vpack.c.b16 %v257, %v256
    %v271 = vpack.c.b16 %v259, %v258
    %v272 = vpack.c.b16 %v261, %v260
    %v273 = vpack.c.b16 %v263, %v262
    %v274 = vpack.c.b16 %v265, %v264
    %v275 = vpack.c.b16 %v267, %v266
    %284 = vmatprep.subr.bf16.mxu0 0
    %285 = vmatpush1.bf16.msra.mxu0 %v268
    %286 = vmatprep.subr.bf16.mxu0 0
    %287 = vmatpush1.bf16.msra.mxu0 %v269
    %288 = vmatprep.subr.bf16.mxu0 0
    %289 = vmatpush1.bf16.msra.mxu0 %v270
    %290 = vmatprep.subr.bf16.mxu0 0
    %291 = vmatpush1.bf16.msra.mxu0 %v271
    %292 = vmatprep.subr.bf16.mxu0 0
    %293 = vmatpush1.bf16.msra.mxu0 %v272
    %294 = vmatprep.subr.bf16.mxu0 0
    %295 = vmatpush1.bf16.msra.mxu0 %v273
    %296 = vmatprep.subr.bf16.mxu0 0
    %297 = vmatpush1.bf16.msra.mxu0 %v274
    %298 = vmatprep.subr.bf16.mxu0 0
    %299 = vmatpush1.bf16.msra.mxu0 %v275
    %300 = vmatprep.subr.bf16.mxu0 0
    %301 = vmatpush1.bf16.msra.mxu0 0
    %302 = vmatprep.subr.bf16.mxu0 0
    %303 = vmatpush1.bf16.msra.mxu0 0
    %304 = vmatprep.subr.bf16.mxu0 0
    %305 = vmatpush1.bf16.msra.mxu0 0
    %306 = vmatprep.subr.bf16.mxu0 0
    %307 = vmatpush1.bf16.msra.mxu0 0
    %308 = vmatprep.subr.bf16.mxu0 0
    %309 = vmatpush1.bf16.msra.mxu0 0
    %310 = vmatprep.subr.bf16.mxu0 0
    %311 = vmatpush1.bf16.msra.mxu0 0
    %312 = vmatprep.subr.bf16.mxu0 0
    %313 = vmatpush1.bf16.msra.mxu0 0
    %314 = vmatprep.subr.bf16.mxu0 0
    %315 = vmatpush1.bf16.msra.mxu0 0
    %316 = vmatprep.mubr.bf16.mxu0 0
    %317 = vmatmul.mubr.bf16.gmra.mrb[0].mxu0 %v212
    %v318 = vpop.f32.mrb[0].mxu0
    %v319 = vadd.f32 %v234, %v318
    %v320 = vpop.f32.mrb[0].mxu0
    %v321 = vpop.f32.mrb[0].mxu0
    %v322 = vadd.f32 %v234, %v321
    %v323 = vpop.f32.mrb[0].mxu0
    %324 = vdwg.mxu0
    %v325 = vmax.f32 %v319, 0.0
    %v326 = vmax.f32 %v322, 0.0
    %v327 = vpack.c.bf16 %v326, %v325
    %v328 = vld [vmem:[#allocation5] sm:$0xf]
    %v329 = vld [vmem:[#allocation5 + $0x4] sm:$0xf]
    %v330 = vld [vmem:[#allocation5 + $0x8] sm:$0xf]
    %v331 = vld [vmem:[#allocation5 + $0xc] sm:$0xf]
    %v332 = vld [vmem:[#allocation5 + $0x10] sm:$0xf]
    %v333 = vld [vmem:[#allocation5 + $0x14] sm:$0xf]
    %v334 = vld [vmem:[#allocation5 + $0x18] sm:$0xf]
    %v335 = vld [vmem:[#allocation5 + $0x1c] sm:$0xf]
    %v336 = vld [vmem:[#allocation5 + $0x20] sm:$0xf]
    %v337 = vld [vmem:[#allocation5 + $0x24] sm:$0xf]
    %v338 = vld [vmem:[#allocation5 + $0x28] sm:$0xf]
    %v339 = vld [vmem:[#allocation5 + $0x2c] sm:$0xf]
    %v340 = vld [vmem:[#allocation5 + $0x30] sm:$0xf]
    %v341 = vld [vmem:[#allocation5 + $0x34] sm:$0xf]
    %v342 = vld [vmem:[#allocation5 + $0x38] sm:$0xf]
    %v343 = vld [vmem:[#allocation5 + $0x3c] sm:$0xf]
    %v344 = vld [vmem:[#allocation7] sm:$0x1]
    %v346 = vlaneseq
    %v347 = vshrl.u32 %v346, 7
    %v348 = vsub.s32 0, %v347
    %v349 = vrot.slane %v344, %v348
    %v367 = vunpack.c.l.b16 %v328
    %v368 = vunpack.c.l.b16 %v329
    %v369 = vunpack.c.l.b16 %v330
    %v370 = vunpack.c.l.b16 %v331
    %v371 = vunpack.c.l.b16 %v332
    %v372 = vunpack.c.l.b16 %v333
    %v373 = vunpack.c.l.b16 %v334
    %v374 = vunpack.c.l.b16 %v335
    %v375 = vunpack.c.l.b16 %v336
    %v376 = vunpack.c.l.b16 %v337
    %v377 = vunpack.c.l.b16 %v338
    %v378 = vunpack.c.l.b16 %v339
    %v379 = vunpack.c.l.b16 %v340
    %v380 = vunpack.c.l.b16 %v341
    %v381 = vunpack.c.l.b16 %v342
    %v382 = vunpack.c.l.b16 %v343
    %v383 = vpack.c.b16 %v368, %v367
    %v384 = vpack.c.b16 %v370, %v369
    %v385 = vpack.c.b16 %v372, %v371
    %v386 = vpack.c.b16 %v374, %v373
    %v387 = vpack.c.b16 %v376, %v375
    %v388 = vpack.c.b16 %v378, %v377
    %v389 = vpack.c.b16 %v380, %v379
    %v390 = vpack.c.b16 %v382, %v381
    %399 = vmatprep.subr.bf16.mxu0 0
    %400 = vmatpush1.bf16.msra.mxu0 %v383
    %401 = vmatprep.subr.bf16.mxu0 0
    %402 = vmatpush1.bf16.msra.mxu0 %v384
    %403 = vmatprep.subr.bf16.mxu0 0
    %404 = vmatpush1.bf16.msra.mxu0 %v385
    %405 = vmatprep.subr.bf16.mxu0 0
    %406 = vmatpush1.bf16.msra.mxu0 %v386
    %407 = vmatprep.subr.bf16.mxu0 0
    %408 = vmatpush1.bf16.msra.mxu0 %v387
    %409 = vmatprep.subr.bf16.mxu0 0
    %410 = vmatpush1.bf16.msra.mxu0 %v388
    %411 = vmatprep.subr.bf16.mxu0 0
    %412 = vmatpush1.bf16.msra.mxu0 %v389
    %413 = vmatprep.subr.bf16.mxu0 0
    %414 = vmatpush1.bf16.msra.mxu0 %v390
    %415 = vmatprep.subr.bf16.mxu0 0
    %416 = vmatpush1.bf16.msra.mxu0 0
    %417 = vmatprep.subr.bf16.mxu0 0
    %418 = vmatpush1.bf16.msra.mxu0 0
    %419 = vmatprep.subr.bf16.mxu0 0
    %420 = vmatpush1.bf16.msra.mxu0 0
    %421 = vmatprep.subr.bf16.mxu0 0
    %422 = vmatpush1.bf16.msra.mxu0 0
    %423 = vmatprep.subr.bf16.mxu0 0
    %424 = vmatpush1.bf16.msra.mxu0 0
    %425 = vmatprep.subr.bf16.mxu0 0
    %426 = vmatpush1.bf16.msra.mxu0 0
    %427 = vmatprep.subr.bf16.mxu0 0
    %428 = vmatpush1.bf16.msra.mxu0 0
    %429 = vmatprep.subr.bf16.mxu0 0
    %430 = vmatpush1.bf16.msra.mxu0 0
    %431 = vmatprep.mubr.bf16.mxu0 0
    %432 = vmatmul.mubr.bf16.gmra.mrb[0].mxu0 %v327
    %v433 = vpop.f32.mrb[0].mxu0
    %v434 = vadd.f32 %v349, %v433
    %v435 = vpop.f32.mrb[0].mxu0
    %v436 = vpop.f32.mrb[0].mxu0
    %v437 = vadd.f32 %v349, %v436
    %v438 = vpop.f32.mrb[0].mxu0
    %439 = vdwg.mxu0
    %v440 = vmax.f32 %v434, 0.0
    %v441 = vmax.f32 %v437, 0.0
    %v442 = vpack.c.bf16 %v441, %v440
    %v443 = vld [vmem:[%s8] sm:$0xf]
    %v444 = vld [vmem:[%s8 + $0x4] sm:$0xf]
    %v445 = vld [vmem:[%s8 + $0x8] sm:$0xf]
    %v446 = vld [vmem:[%s8 + $0xc] sm:$0xf]
    %v447 = vld [vmem:[%s8 + $0x10] sm:$0xf]
    %v448 = vld [vmem:[%s8 + $0x14] sm:$0xf]
    %v449 = vld [vmem:[%s8 + $0x18] sm:$0xf]
    %v450 = vld [vmem:[%s8 + $0x1c] sm:$0xf]
    %v451 = vld [vmem:[%s8 + $0x20] sm:$0xf]
    %v452 = vld [vmem:[%s8 + $0x24] sm:$0xf]
    %v453 = vld [vmem:[%s8 + $0x28] sm:$0xf]
    %v454 = vld [vmem:[%s8 + $0x2c] sm:$0xf]
    %v455 = vld [vmem:[%s8 + $0x30] sm:$0xf]
    %v456 = vld [vmem:[%s8 + $0x34] sm:$0xf]
    %v457 = vld [vmem:[%s8 + $0x38] sm:$0xf]
    %v458 = vld [vmem:[%s8 + $0x3c] sm:$0xf]
    %v459 = vld [vmem:[%s9] sm:$0x1]
    %v461 = vlaneseq
    %v462 = vshrl.u32 %v461, 7
    %v463 = vsub.s32 0, %v462
    %v464 = vrot.slane %v459, %v463
    %v482 = vunpack.c.l.b16 %v443
    %v483 = vunpack.c.l.b16 %v444
    %v484 = vunpack.c.l.b16 %v445
    %v485 = vunpack.c.l.b16 %v446
    %v486 = vunpack.c.l.b16 %v447
    %v487 = vunpack.c.l.b16 %v448
    %v488 = vunpack.c.l.b16 %v449
    %v489 = vunpack.c.l.b16 %v450
    %v490 = vunpack.c.l.b16 %v451
    %v491 = vunpack.c.l.b16 %v452
    %v492 = vunpack.c.l.b16 %v453
    %v493 = vunpack.c.l.b16 %v454
    %v494 = vunpack.c.l.b16 %v455
    %v495 = vunpack.c.l.b16 %v456
    %v496 = vunpack.c.l.b16 %v457
    %v497 = vunpack.c.l.b16 %v458
    %v498 = vpack.c.b16 %v483, %v482
    %v499 = vpack.c.b16 %v485, %v484
    %v500 = vpack.c.b16 %v487, %v486
    %v501 = vpack.c.b16 %v489, %v488
    %v502 = vpack.c.b16 %v491, %v490
    %v503 = vpack.c.b16 %v493, %v492
    %v504 = vpack.c.b16 %v495, %v494
    %v505 = vpack.c.b16 %v497, %v496
    %514 = vmatprep.subr.bf16.mxu0 0
    %515 = vmatpush1.bf16.msra.mxu0 %v498
    %516 = vmatprep.subr.bf16.mxu0 0
    %517 = vmatpush1.bf16.msra.mxu0 %v499
    %518 = vmatprep.subr.bf16.mxu0 0
    %519 = vmatpush1.bf16.msra.mxu0 %v500
    %520 = vmatprep.subr.bf16.mxu0 0
    %521 = vmatpush1.bf16.msra.mxu0 %v501
    %522 = vmatprep.subr.bf16.mxu0 0
    %523 = vmatpush1.bf16.msra.mxu0 %v502
    %524 = vmatprep.subr.bf16.mxu0 0
    %525 = vmatpush1.bf16.msra.mxu0 %v503
    %526 = vmatprep.subr.bf16.mxu0 0
    %527 = vmatpush1.bf16.msra.mxu0 %v504
    %528 = vmatprep.subr.bf16.mxu0 0
    %529 = vmatpush1.bf16.msra.mxu0 %v505
    %530 = vmatprep.subr.bf16.mxu0 0
    %531 = vmatpush1.bf16.msra.mxu0 0
    %532 = vmatprep.subr.bf16.mxu0 0
    %533 = vmatpush1.bf16.msra.mxu0 0
    %534 = vmatprep.subr.bf16.mxu0 0
    %535 = vmatpush1.bf16.msra.mxu0 0
    %536 = vmatprep.subr.bf16.mxu0 0
    %537 = vmatpush1.bf16.msra.mxu0 0
    %538 = vmatprep.subr.bf16.mxu0 0
    %539 = vmatpush1.bf16.msra.mxu0 0
    %540 = vmatprep.subr.bf16.mxu0 0
    %541 = vmatpush1.bf16.msra.mxu0 0
    %542 = vmatprep.subr.bf16.mxu0 0
    %543 = vmatpush1.bf16.msra.mxu0 0
    %544 = vmatprep.subr.bf16.mxu0 0
    %545 = vmatpush1.bf16.msra.mxu0 0
    %546 = vmatprep.mubr.bf16.mxu0 0
    %547 = vmatmul.mubr.bf16.gmra.mrb[0].mxu0 %v442
    %v548 = vpop.f32.mrb[0].mxu0
    %v549 = vadd.f32 %v464, %v548
    %v550 = vpop.f32.mrb[0].mxu0
    %v551 = vpop.f32.mrb[0].mxu0
    %v552 = vadd.f32 %v464, %v551
    %v553 = vpop.f32.mrb[0].mxu0
    %554 = vdwg.mxu0
    %v555 = vmul.f32 %v549, 0.5
    %v556 = vmul.f32 %v552, 0.5
    %v557 = vtanh.pop %v555
    %v558 = vtanh.pop %v556
    %v559 = vmul.f32 %v557, 0.5
    %v560 = vmul.f32 %v558, 0.5
    %v561 = vadd.f32 %v559, 0.5
    %v562 = vadd.f32 %v560, 0.5
    %563 = vst.msk [vmem:[%s10] sm:$0xff] %vm79, %v561
    %564 = vst.msk [vmem:[%s10 + $0x8] sm:$0xff] %vm79, %v562
    // Predicated region
    $region54: #{nn_forward.1} parent=1 // pred_check
      _
    $region55: #{nn_forward.1} parent=1 // pred_check_branch
      %566 = sbr.rel (0) target = $region57
    $region56: #{nn_forward.1} parent=1 // pred_region
      _
    $region57: #{nn_forward.1} parent=1 // pred_fallthru
      _
    // Predicated region
    $region58: #{nn_forward.1} parent=1 // pred_check
      _
    $region59: #{nn_forward.1} parent=1 // pred_check_branch
      %568 = sbr.rel (0) target = $region61
    $region60: #{nn_forward.1} parent=1 // pred_region
      _
    $region61: #{nn_forward.1} parent=1 // pred_fallthru
      _
    %569 = vsyncpa [#allocation4], 1
    %570 = vsyncpa [#allocation6], 1

</llo_original>
